<compile_context>
chip_gen: v5e
topology: v5e:2x2
jax: 0.10.0
libtpu: 0.0.40
codegen_flags: <defaults>
</compile_context>

<pallas_src>
import math

import jax
import jax.numpy as jnp
from jax.experimental import pallas as pl
from jax.experimental.pallas import tpu as pltpu

_LOG_2PI = math.log(2.0 * math.pi)
_LOG_2 = math.log(2.0)


def _round_up(n, m):
    return ((n + m - 1) // m) * m


def _softplus(z):
    # numerically stable softplus; exp/log go to the EUP slot (cheap alongside VPU work)
    return jnp.maximum(z, 0.0) + jnp.log(1.0 + jnp.exp(-jnp.abs(z)))


def make_actor_kernel(num_hidden, hidden_widths, action_dim, max_action, matmul_dtype):
    def kernel(*refs):
        # refs = x, eps, W_0..W_{H-1}, W_head, b_packed, out
        x_ref, eps_ref = refs[0], refs[1]
        w_refs = refs[2:2 + num_hidden]
        wh_ref = refs[2 + num_hidden]
        b_ref = refs[3 + num_hidden]
        out_ref = refs[4 + num_hidden]

        x = x_ref[...].astype(matmul_dtype)
        for i in range(num_hidden):
            h = hidden_widths[i]
            y = jnp.dot(x, w_refs[i][...], preferred_element_type=jnp.float32)
            y = y + b_ref[i:i + 1, :h]                 # static slice; bias add in f32
            x = jnp.maximum(y, 0.0).astype(matmul_dtype)

        # fused mean / log_std head: one MXU pass, slice lanes afterwards
        head = jnp.dot(x, wh_ref[...], preferred_element_type=jnp.float32)
        head = head + b_ref[num_hidden:num_hidden + 1, :2 * action_dim]

        mean = head[:, :action_dim]
        log_std = jnp.clip(head[:, action_dim:], -20.0, 2.0)
        std = jnp.exp(log_std)

        eps = eps_ref[...]
        a_pre = mean + std * eps                       # rsample (eps==0 => deterministic)

        # Normal(mean, std).log_prob(a_pre): (a_pre - mean)/std == eps exactly, no divide.
        log_prob = -0.5 * (eps * eps) - log_std - 0.5 * _LOG_2PI
        # tanh-squash correction: 2*(log 2 - a - softplus(-2a))
        corr = 2.0 * (_LOG_2 - a_pre - _softplus(-2.0 * a_pre))
        # single cross-lane reduction (one XLU pass instead of two)
        log_pi = jnp.sum(log_prob - corr, axis=1, keepdims=True)

        a = max_action * jnp.tanh(a_pre)
        # lane-packed output slab: [a | log_pi] -> single writeback
        out_ref[...] = jnp.concatenate([a, log_pi], axis=1)

    return kernel


def actor_forward_pallas(x, eps, params, max_action, *, block_b=256,
                         matmul_dtype=jnp.float32):
    """params = (hidden_ws, hidden_bs, wm, bm, ws, bs); weights are [in, out]."""
    hidden_ws, hidden_bs, wm, bm, ws, bs = params
    num_hidden = len(hidden_ws)
    hidden_widths = tuple(int(w.shape[1]) for w in hidden_ws)
    batch, state_dim = x.shape
    action_dim = int(wm.shape[1])

    # --- fuse the two heads into one weight / bias ---
    w_head = jnp.concatenate([wm, ws], axis=1)                 # [hidden, 2*action_dim]
    b_head = jnp.concatenate([bm, bs], axis=0)                 # [2*action_dim]

    # --- pack all biases into a single [H+1, max_w] f32 array ---
    max_w = max(max(hidden_widths), 2 * action_dim)
    b_rows = [jnp.pad(b, (0, max_w - b.shape[0])) for b in hidden_bs]
    b_rows.append(jnp.pad(b_head, (0, max_w - b_head.shape[0])))
    b_packed = jnp.stack(b_rows, axis=0).astype(jnp.float32)   # [H+1, max_w]

    # --- MXU input dtype (bf16 on v6e/v7x is a perf win; accumulate stays f32) ---
    weights = [w.astype(matmul_dtype) for w in hidden_ws] + [w_head.astype(matmul_dtype)]

    # --- batch grid: pick the largest tile <= block_b that covers the batch, pad to it ---
    block_b = _round_up(min(block_b, _round_up(batch, 8)), 8)
    padded = _round_up(batch, block_b)
    if padded != batch:
        x = jnp.pad(x, ((0, padded - batch), (0, 0)))
        eps = jnp.pad(eps, ((0, padded - batch), (0, 0)))
    grid = (padded // block_b,)

    in_specs = [
        pl.BlockSpec((block_b, state_dim), lambda i: (i, 0)),
        pl.BlockSpec((block_b, action_dim), lambda i: (i, 0)),
    ]
    for w in weights:                                          # resident across the grid
        in_specs.append(pl.BlockSpec(w.shape, lambda i: (0, 0)))
    in_specs.append(pl.BlockSpec(b_packed.shape, lambda i: (0, 0)))

    out_spec = pl.BlockSpec((block_b, action_dim + 1), lambda i: (i, 0))
    out_shape = jax.ShapeDtypeStruct((padded, action_dim + 1), jnp.float32)

    kernel = make_actor_kernel(num_hidden, hidden_widths, action_dim, float(max_action),
                               matmul_dtype)
    packed = pl.pallas_call(
        kernel,
        out_shape=out_shape,
        grid=grid,
        in_specs=in_specs,
        out_specs=out_spec,
        compiler_params=pltpu.CompilerParams(dimension_semantics=("parallel",)),
    )(x, eps, *weights, b_packed)

    a = packed[:batch, :action_dim]
    log_pi = packed[:batch, action_dim:]
    return a, log_pi


def actor_forward_ref(x, eps, params, max_action):
    """Pure-JAX f32 reference (mirrors the PyTorch module)."""
    hidden_ws, hidden_bs, wm, bm, ws, bs = params
    for w, b in zip(hidden_ws, hidden_bs):
        x = jnp.maximum(x @ w + b, 0.0)
    mean = x @ wm + bm
    log_std = jnp.clip(x @ ws + bs, -20.0, 2.0)
    std = jnp.exp(log_std)
    a_pre = mean + std * eps
    zz = (a_pre - mean) / std
    log_prob = -0.5 * zz * zz - log_std - 0.5 * _LOG_2PI
    log_pi = jnp.sum(log_prob, axis=1, keepdims=True)
    corr = 2.0 * (_LOG_2 - a_pre - jax.nn.softplus(-2.0 * a_pre))
    log_pi = log_pi - jnp.sum(corr, axis=1, keepdims=True)
    return max_action * jnp.tanh(a_pre), log_pi


def init_linear(key, fan_in, fan_out):
    # PyTorch nn.Linear default: U(-1/sqrt(fan_in), 1/sqrt(fan_in)); returned pre-transposed
    # to [in, out] so the kernel hot path is x @ W + b on the MXU.
    kw, kb = jax.random.split(key)
    bound = 1.0 / math.sqrt(fan_in)
    w = jax.random.uniform(kw, (fan_in, fan_out), jnp.float32, -bound, bound)
    b = jax.random.uniform(kb, (fan_out,), jnp.float32, -bound, bound)
    return w, b


if __name__ == "__main__":
    state_dim = 16
    hidden_width = (32, 32)
    action_dim = 4
    max_action = 2.0
    batch = 8

    key = jax.random.PRNGKey(0)
    keys = jax.random.split(key, len(hidden_width) + 4)

    hidden_ws, hidden_bs = [], []
    in_dim = state_dim
    for i, h in enumerate(hidden_width):
        w, b = init_linear(keys[i], in_dim, h)
        hidden_ws.append(w)
        hidden_bs.append(b)
        in_dim = h
    wm, bm = init_linear(keys[len(hidden_width)], in_dim, action_dim)
    ws, bs = init_linear(keys[len(hidden_width) + 1], in_dim, action_dim)
    params = (hidden_ws, hidden_bs, wm, bm, ws, bs)

    x = jax.random.normal(keys[-2], (batch, state_dim), jnp.float32)
    # stochastic path (deterministic=False): eps ~ N(0,1); pass zeros for deterministic=True
    # TODO(synk): eps could also be generated in-kernel via pltpu.prng_random_bits; kept as an
    # input so the torch rsample noise stays externally reproducible.
    eps = jax.random.normal(keys[-1], (batch, action_dim), jnp.float32)

    # f32 MXU path: exact match against the reference
    a, log_pi = actor_forward_pallas(x, eps, params, max_action)
    jax.block_until_ready((a, log_pi))
    a_ref, log_pi_ref = actor_forward_ref(x, eps, params, max_action)
    assert jnp.allclose(a, a_ref, atol=2e-5, rtol=1e-5)
    assert jnp.allclose(log_pi, log_pi_ref, atol=2e-4, rtol=1e-4)

    # deterministic=True path (eps = 0)
    a_det, log_pi_det = actor_forward_pallas(x, jnp.zeros_like(eps), params, max_action)
    jax.block_until_ready((a_det, log_pi_det))
    a_dref, log_pi_dref = actor_forward_ref(x, jnp.zeros_like(eps), params, max_action)
    assert jnp.allclose(a_det, a_dref, atol=2e-5, rtol=1e-5)
    assert jnp.allclose(log_pi_det, log_pi_dref, atol=2e-4, rtol=1e-4)

    # grid / padding path: batch not a multiple of the block -> pad + multi-block grid
    batch2 = 20
    kx, ke = jax.random.split(jax.random.PRNGKey(1))
    x2 = jax.random.normal(kx, (batch2, state_dim), jnp.float32)
    eps2 = jax.random.normal(ke, (batch2, action_dim), jnp.float32)
    a2, lp2 = actor_forward_pallas(x2, eps2, params, max_action, block_b=8)
    jax.block_until_ready((a2, lp2))
    a2_ref, lp2_ref = actor_forward_ref(x2, eps2, params, max_action)
    assert jnp.allclose(a2, a2_ref, atol=2e-5, rtol=1e-5)
    assert jnp.allclose(lp2, lp2_ref, atol=2e-4, rtol=1e-4)

    # bf16 MXU-input path (f32 accumulate & elementwise math) — loose check vs f32 reference
    a_bf, lp_bf = actor_forward_pallas(x, eps, params, max_action,
                                       matmul_dtype=jnp.bfloat16)
    jax.block_until_ready((a_bf, lp_bf))
    assert bool(jnp.all(jnp.isfinite(a_bf))) and bool(jnp.all(jnp.isfinite(lp_bf)))
    assert jnp.allclose(a_bf, a_ref, atol=0.25, rtol=0.05)
    assert jnp.allclose(lp_bf, log_pi_ref, atol=0.5, rtol=0.1)

    print("KERNEL_OK")
</pallas_src>

<mosaic_0001>
module attributes {stable_mosaic.version = 11 : i64} {
  func.func @kernel(%arg0: i32, %arg1: memref<8x16xf32, #tpu.memory_space<vmem>>, %arg2: memref<8x4xf32, #tpu.memory_space<vmem>>, %arg3: memref<16x32xf32, #tpu.memory_space<vmem>>, %arg4: memref<32x32xf32, #tpu.memory_space<vmem>>, %arg5: memref<32x8xf32, #tpu.memory_space<vmem>>, %arg6: memref<3x32xf32, #tpu.memory_space<vmem>>, %arg7: memref<8x5xf32, #tpu.memory_space<vmem>>) attributes {dimension_semantics = [#tpu.dimension_semantics<parallel>], iteration_bounds = array<i64: 1>, scalar_prefetch = 0 : i64, scratch_operands = 0 : i64, tpu.core_type = #tpu.core_type<tc>, window_params = [{transform_indices = @transform_0, window_bounds = array<i64: 8, 16>}, {transform_indices = @transform_1, window_bounds = array<i64: 8, 4>}, {pipeline_mode = #tpu.pipeline_mode<synchronous>, transform_indices = @transform_2, window_bounds = array<i64: 16, 32>}, {pipeline_mode = #tpu.pipeline_mode<synchronous>, transform_indices = @transform_3, window_bounds = array<i64: 32, 32>}, {pipeline_mode = #tpu.pipeline_mode<synchronous>, transform_indices = @transform_4, window_bounds = array<i64: 32, 8>}, {pipeline_mode = #tpu.pipeline_mode<synchronous>, transform_indices = @transform_5, window_bounds = array<i64: 3, 32>}, {transform_indices = @transform_6, window_bounds = array<i64: 8, 5>}]} {
    %c0 = arith.constant 0 : index
    %c0_0 = arith.constant 0 : index
    %0 = vector.load %arg1[%c0, %c0_0] : memref<8x16xf32, #tpu.memory_space<vmem>>, vector<8x16xf32>
    %c0_1 = arith.constant 0 : index
    %c0_2 = arith.constant 0 : index
    %1 = vector.load %arg3[%c0_1, %c0_2] : memref<16x32xf32, #tpu.memory_space<vmem>>, vector<16x32xf32>
    %cst = arith.constant dense<0.000000e+00> : vector<8x32xf32>
    %2 = tpu.matmul %0, %1, %cst {dimension_numbers = #tpu.dot_dimension_numbers<[1], [0], [0], [1], [0, 0, 1, 1], [], []>} : vector<8x16xf32>, vector<16x32xf32>, vector<8x32xf32> -> vector<8x32xf32>
    %c0_3 = arith.constant 0 : index
    %c0_4 = arith.constant 0 : index
    %3 = vector.load %arg6[%c0_3, %c0_4] : memref<3x32xf32, #tpu.memory_space<vmem>>, vector<1x32xf32>
    %4 = vector.broadcast %3 : vector<1x32xf32> to vector<8x32xf32>
    %5 = arith.addf %2, %4 : vector<8x32xf32>
    %cst_5 = arith.constant 0.000000e+00 : f32
    %6 = vector.broadcast %cst_5 : f32 to vector<8x32xf32>
    %7 = arith.maximumf %5, %6 : vector<8x32xf32>
    %c0_6 = arith.constant 0 : index
    %c0_7 = arith.constant 0 : index
    %8 = vector.load %arg4[%c0_6, %c0_7] : memref<32x32xf32, #tpu.memory_space<vmem>>, vector<32x32xf32>
    %cst_8 = arith.constant dense<0.000000e+00> : vector<8x32xf32>
    %9 = tpu.matmul %7, %8, %cst_8 {dimension_numbers = #tpu.dot_dimension_numbers<[1], [0], [0], [1], [0, 0, 1, 1], [], []>} : vector<8x32xf32>, vector<32x32xf32>, vector<8x32xf32> -> vector<8x32xf32>
    %c1 = arith.constant 1 : index
    %c0_9 = arith.constant 0 : index
    %10 = vector.load %arg6[%c1, %c0_9] : memref<3x32xf32, #tpu.memory_space<vmem>>, vector<1x32xf32>
    %11 = vector.broadcast %10 : vector<1x32xf32> to vector<8x32xf32>
    %12 = arith.addf %9, %11 : vector<8x32xf32>
    %cst_10 = arith.constant 0.000000e+00 : f32
    %13 = vector.broadcast %cst_10 : f32 to vector<8x32xf32>
    %14 = arith.maximumf %12, %13 : vector<8x32xf32>
    %c0_11 = arith.constant 0 : index
    %c0_12 = arith.constant 0 : index
    %15 = vector.load %arg5[%c0_11, %c0_12] : memref<32x8xf32, #tpu.memory_space<vmem>>, vector<32x8xf32>
    %cst_13 = arith.constant dense<0.000000e+00> : vector<8x8xf32>
    %16 = tpu.matmul %14, %15, %cst_13 {dimension_numbers = #tpu.dot_dimension_numbers<[1], [0], [0], [1], [0, 0, 1, 1], [], []>} : vector<8x32xf32>, vector<32x8xf32>, vector<8x8xf32> -> vector<8x8xf32>
    %c2 = arith.constant 2 : index
    %c0_14 = arith.constant 0 : index
    %17 = vector.load %arg6[%c2, %c0_14] : memref<3x32xf32, #tpu.memory_space<vmem>>, vector<1x8xf32>
    %18 = vector.broadcast %17 : vector<1x8xf32> to vector<8x8xf32>
    %19 = arith.addf %16, %18 : vector<8x8xf32>
    %20 = vector.extract_strided_slice %19 {offsets = [0, 0], sizes = [8, 4], strides = [1, 1]} : vector<8x8xf32> to vector<8x4xf32>
    %21 = vector.extract_strided_slice %19 {offsets = [0, 4], sizes = [8, 4], strides = [1, 1]} : vector<8x8xf32> to vector<8x4xf32>
    %cst_15 = arith.constant -2.000000e+01 : f32
    %cst_16 = arith.constant 2.000000e+00 : f32
    %22 = vector.broadcast %cst_15 : f32 to vector<8x4xf32>
    %23 = arith.maximumf %22, %21 : vector<8x4xf32>
    %24 = vector.broadcast %cst_16 : f32 to vector<8x4xf32>
    %25 = arith.minimumf %24, %23 : vector<8x4xf32>
    %26 = math.exp %25 : vector<8x4xf32>
    %c0_17 = arith.constant 0 : index
    %c0_18 = arith.constant 0 : index
    %27 = vector.load %arg2[%c0_17, %c0_18] : memref<8x4xf32, #tpu.memory_space<vmem>>, vector<8x4xf32>
    %28 = arith.mulf %26, %27 : vector<8x4xf32>
    %29 = arith.addf %20, %28 : vector<8x4xf32>
    %30 = arith.mulf %27, %27 : vector<8x4xf32>
    %cst_19 = arith.constant -5.000000e-01 : f32
    %31 = vector.broadcast %cst_19 : f32 to vector<8x4xf32>
    %32 = arith.mulf %31, %30 : vector<8x4xf32>
    %33 = arith.subf %32, %25 : vector<8x4xf32>
    %cst_20 = arith.constant 0.918938517 : f32
    %34 = vector.broadcast %cst_20 : f32 to vector<8x4xf32>
    %35 = arith.subf %33, %34 : vector<8x4xf32>
    %cst_21 = arith.constant 0.693147182 : f32
    %36 = vector.broadcast %cst_21 : f32 to vector<8x4xf32>
    %37 = arith.subf %36, %29 : vector<8x4xf32>
    %cst_22 = arith.constant -2.000000e+00 : f32
    %38 = vector.broadcast %cst_22 : f32 to vector<8x4xf32>
    %39 = arith.mulf %38, %29 : vector<8x4xf32>
    %cst_23 = arith.constant 0.000000e+00 : f32
    %40 = vector.broadcast %cst_23 : f32 to vector<8x4xf32>
    %41 = arith.maximumf %39, %40 : vector<8x4xf32>
    %42 = math.absf %39 : vector<8x4xf32>
    %cst_24 = arith.constant 0.000000e+00 : f32
    %43 = vector.broadcast %cst_24 : f32 to vector<8x4xf32>
    %44 = arith.subf %43, %42 : vector<8x4xf32>
    %45 = math.exp %44 : vector<8x4xf32>
    %cst_25 = arith.constant 1.000000e+00 : f32
    %46 = vector.broadcast %cst_25 : f32 to vector<8x4xf32>
    %47 = arith.addf %46, %45 : vector<8x4xf32>
    %48 = math.log %47 : vector<8x4xf32>
    %49 = arith.addf %41, %48 : vector<8x4xf32>
    %50 = arith.subf %37, %49 : vector<8x4xf32>
    %cst_26 = arith.constant 2.000000e+00 : f32
    %51 = vector.broadcast %cst_26 : f32 to vector<8x4xf32>
    %52 = arith.mulf %51, %50 : vector<8x4xf32>
    %53 = arith.subf %35, %52 : vector<8x4xf32>
    %cst_27 = arith.constant dense<0.000000e+00> : vector<8xf32>
    %54 = vector.multi_reduction <add>, %53, %cst_27 [1] : vector<8x4xf32> to vector<8xf32>
    %55 = vector.shape_cast %54 : vector<8xf32> to vector<8x1xf32>
    %56 = math.tanh %29 : vector<8x4xf32>
    %cst_28 = arith.constant 2.000000e+00 : f32
    %57 = vector.broadcast %cst_28 : f32 to vector<8x4xf32>
    %58 = arith.mulf %57, %56 : vector<8x4xf32>
    %59 = tpu.concatenate %58, %55 in 1 : vector<8x4xf32>, vector<8x1xf32> -> vector<8x5xf32>
    %c0_29 = arith.constant 0 : index
    %c0_30 = arith.constant 0 : index
    %60 = vector.load %arg7[%c0_29, %c0_30] : memref<8x5xf32, #tpu.memory_space<vmem>>, vector<8x5xf32>
    tpu.vector_store %arg7[%c0_29, %c0_30], %59 {strides = array<i32>} : memref<8x5xf32, #tpu.memory_space<vmem>>, vector<8x5xf32>,
    return
  }
  func.func @transform_0(%arg0: i32) -> (i32, i32) {
    %c0_i32 = arith.constant 0 : i32
    %c0_i32_0 = arith.constant 0 : i32
    return %arg0, %c0_i32 : i32, i32
  }
  func.func @transform_1(%arg0: i32) -> (i32, i32) {
    %c0_i32 = arith.constant 0 : i32
    %c0_i32_0 = arith.constant 0 : i32
    return %arg0, %c0_i32 : i32, i32
  }
  func.func @transform_2(%arg0: i32) -> (i32, i32) {
    %c0_i32 = arith.constant 0 : i32
    %c0_i32_0 = arith.constant 0 : i32
    %c0_i32_1 = arith.constant 0 : i32
    return %c0_i32, %c0_i32_0 : i32, i32
  }
  func.func @transform_3(%arg0: i32) -> (i32, i32) {
    %c0_i32 = arith.constant 0 : i32
    %c0_i32_0 = arith.constant 0 : i32
    %c0_i32_1 = arith.constant 0 : i32
    return %c0_i32, %c0_i32_0 : i32, i32
  }
  func.func @transform_4(%arg0: i32) -> (i32, i32) {
    %c0_i32 = arith.constant 0 : i32
    %c0_i32_0 = arith.constant 0 : i32
    %c0_i32_1 = arith.constant 0 : i32
    return %c0_i32, %c0_i32_0 : i32, i32
  }
  func.func @transform_5(%arg0: i32) -> (i32, i32) {
    %c0_i32 = arith.constant 0 : i32
    %c0_i32_0 = arith.constant 0 : i32
    %c0_i32_1 = arith.constant 0 : i32
    return %c0_i32, %c0_i32_0 : i32, i32
  }
  func.func @transform_6(%arg0: i32) -> (i32, i32) {
    %c0_i32 = arith.constant 0 : i32
    %c0_i32_0 = arith.constant 0 : i32
    return %arg0, %c0_i32 : i32, i32
  }
}

</mosaic_0001>

<llo_original>
// kernel: tpu_custom_call.1
$region0: #{tpu_custom_call.1}
  #allocation0 [shape = 'u32[]', space=smem, size = 0x4, offset = 0x4, fixed_abs, tag = 'smem constant byte address 0x4 - core index']
  #allocation1 [shape = 'u32[72,128]{1,0:T(1,128)}', space=vmem, size = 0x9000, scoped, tag = 'internal scratch']
  %s0 = inlined_call_operand.vmem [shape: f32[8,16], index: 0, kind: input, shape index: {}]
  %s1 = inlined_call_operand.vmem [shape: f32[8,4], index: 1, kind: input, shape index: {}]
  %s2 = inlined_call_operand.hbm [shape: f32[16,32], index: 2, kind: input, shape index: {}]
  %s3 = inlined_call_operand.vmem [shape: f32[32,32], index: 3, kind: input, shape index: {}]
  %s4 = inlined_call_operand.vmem [shape: f32[32,8], index: 4, kind: input, shape index: {}]
  %s5 = inlined_call_operand.vmem [shape: f32[3,32], index: 5, kind: input, shape index: {}]
  %s6 = inlined_call_operand.hbm [shape: f32[8,5], index: 6, kind: output, shape index: {}]
  %s7 = sld [smem:[#allocation0]]
  $region38: #{tpu_custom_call.1} parent=0
    _
  %s9 = ssub.s32 1, %s7
  %s10 = scalar_select 0, %s9, %s7
  $region1: #{tpu_custom_call.1} parent=0
    #allocation2 [shape = 'u8[8192]{0}', space=vmem, size = 0x2000, scoped, tag = 'input window, operand 2, single buffered']
    #allocation3 [shape = 's32[1]{0}', space=sflag, size = 0x4, scoped, tag = 'scoped memory for tpu_custom_call.1']
    #allocation4 [shape = 's32[1]{0}', space=sflag, size = 0x4, scoped, tag = 'scoped memory for tpu_custom_call.1']
    #allocation5 [shape = 'u8[4096]{0}', space=vmem, size = 0x1000, scoped, tag = 'output window, operand 0, single buffered']
    %11 = vsyncpa [#allocation3], 0
    %12 = vsyncpa [#allocation4], 0
    // Predicated region
    $region2: #{tpu_custom_call.1} parent=1 // pred_check
      _
    $region3: #{tpu_custom_call.1} parent=1 // pred_check_branch
      %14 = sbr.rel (0) target = $region5
    $region4: #{tpu_custom_call.1} parent=1 // pred_region
      _
    $region5: #{tpu_custom_call.1} parent=1 // pred_fallthru
      _
    // Predicated region
    $region6: #{tpu_custom_call.1} parent=1 // pred_check
      _
    $region7: #{tpu_custom_call.1} parent=1 // pred_check_branch
      %16 = sbr.rel (0) target = $region9
    $region8: #{tpu_custom_call.1} parent=1 // pred_region
      _
    $region9: #{tpu_custom_call.1} parent=1 // pred_fallthru
      _
    // Predicated region
    $region10: #{tpu_custom_call.1} parent=1 // pred_check
      _
    $region11: #{tpu_custom_call.1} parent=1 // pred_check_branch
      %18 = sbr.rel (0) target = $region13
    $region12: #{tpu_custom_call.1} parent=1 // pred_region
      %20 = vsyncadd [#allocation3], 0
      %s21 = sshll.u32 %s2, 4
      %s22 = int_to_ptr.hbm [resolvable:$true] %s21
      %s23 = sshll.u32 [#allocation2], 4
      %s24 = int_to_ptr.vmem [resolvable:$true] %s23
      %29 = dma.hbm_to_vmem [thread:$0]  %s22, 256, %s24, [#allocation3], 128, 128, 8
    $region13: #{tpu_custom_call.1} parent=1 // pred_fallthru
      _
    // Predicated region
    $region14: #{tpu_custom_call.1} parent=1 // pred_check
      _
    $region15: #{tpu_custom_call.1} parent=1 // pred_check_branch
      %31 = sbr.rel (0) target = $region17
    $region16: #{tpu_custom_call.1} parent=1 // pred_region
      _
    $region17: #{tpu_custom_call.1} parent=1 // pred_fallthru
      _
    // Predicated region
    $region18: #{tpu_custom_call.1} parent=1 // pred_check
      _
    $region19: #{tpu_custom_call.1} parent=1 // pred_check_branch
      %33 = sbr.rel (0) target = $region21
    $region20: #{tpu_custom_call.1} parent=1 // pred_region
      _
    $region21: #{tpu_custom_call.1} parent=1 // pred_fallthru
      _
    // Predicated region
    $region22: #{tpu_custom_call.1} parent=1 // pred_check
      _
    $region23: #{tpu_custom_call.1} parent=1 // pred_check_branch
      %35 = sbr.rel (0) target = $region25
    $region24: #{tpu_custom_call.1} parent=1 // pred_region
      _
    $region25: #{tpu_custom_call.1} parent=1 // pred_fallthru
      _
    // Predicated region
    $region26: #{tpu_custom_call.1} parent=1 // pred_check
      _
    $region27: #{tpu_custom_call.1} parent=1 // pred_check_branch
      %37 = sbr.rel (0) target = $region29
    $region28: #{tpu_custom_call.1} parent=1 // pred_region
      %39 = dma.done [#allocation3], 256
    $region29: #{tpu_custom_call.1} parent=1 // pred_fallthru
      _
    %v40 = vld [vmem:[%s0] sm:$0xff]
    %v41 = vld [vmem:[#allocation2] sm:$0xff]
    %v42 = vld [vmem:[#allocation2 + $0x8] sm:$0xff]
    %v43 = vld [vmem:[%s5] sm:$0x1]
    %v44 = vperm.slane %v43, 0
    %vm45 = vcmask 130048
    %v47 = vsel %vm45, %v40, 0
    %49 = vmatpush.msra.mxu0 0.0
    %50 = vmatpush.msra.mxu0 0.0
    %51 = vmatpush.msra.mxu0 0.0
    %52 = vmatpush.msra.mxu0 0.0
    %53 = vmatpush.msra.mxu0 0.0
    %54 = vmatpush.msra.mxu0 0.0
    %55 = vmatpush.msra.mxu0 0.0
    %56 = vmatpush.msra.mxu0 0.0
    %57 = vmatpush.msra.mxu0 0.0
    %58 = vmatpush.msra.mxu0 0.0
    %59 = vmatpush.msra.mxu0 0.0
    %60 = vmatpush.msra.mxu0 0.0
    %61 = vmatpush.msra.mxu0 0.0
    %62 = vmatpush.msra.mxu0 0.0
    %63 = vmatpush.msra.mxu0 %v42
    %64 = vmatpush.msra.mxu0 %v41
    %65 = vmatmul.f32.gmra.mxu0 %v47
    %v66 = vpop.f32.mrf.mxu0
    %v67 = vadd.f32 %v44, %v66
    %68 = vdwg.mxu0
    %v69 = vmax.f32 %v67, 0.0
    %v70 = vld [vmem:[%s3] sm:$0xff]
    %v71 = vld [vmem:[%s3 + $0x8] sm:$0xff]
    %v72 = vld [vmem:[%s3 + $0x10] sm:$0xff]
    %v73 = vld [vmem:[%s3 + $0x18] sm:$0xff]
    %v74 = vld [vmem:[%s5 + $0x1] sm:$0x1]
    %v75 = vperm.slane %v74, 0
    %vm76 = vcmask 261120
    %v78 = vsel %vm76, %v69, 0
    %80 = vmatpush.msra.mxu0 0.0
    %81 = vmatpush.msra.mxu0 0.0
    %82 = vmatpush.msra.mxu0 0.0
    %83 = vmatpush.msra.mxu0 0.0
    %84 = vmatpush.msra.mxu0 0.0
    %85 = vmatpush.msra.mxu0 0.0
    %86 = vmatpush.msra.mxu0 0.0
    %87 = vmatpush.msra.mxu0 0.0
    %88 = vmatpush.msra.mxu0 0.0
    %89 = vmatpush.msra.mxu0 0.0
    %90 = vmatpush.msra.mxu0 0.0
    %91 = vmatpush.msra.mxu0 0.0
    %92 = vmatpush.msra.mxu0 %v73
    %93 = vmatpush.msra.mxu0 %v72
    %94 = vmatpush.msra.mxu0 %v71
    %95 = vmatpush.msra.mxu0 %v70
    %96 = vmatmul.f32.gmra.mxu0 %v78
    %v97 = vpop.f32.mrf.mxu0
    %v98 = vadd.f32 %v75, %v97
    %99 = vdwg.mxu0
    %v100 = vmax.f32 %v98, 0.0
    %v101 = vld [vmem:[%s4] sm:$0xff]
    %v102 = vld [vmem:[%s4 + $0x8] sm:$0xff]
    %v103 = vld [vmem:[%s4 + $0x10] sm:$0xff]
    %v104 = vld [vmem:[%s4 + $0x18] sm:$0xff]
    %v105 = vld [vmem:[%s5 + $0x2] sm:$0x1]
    %v106 = vperm.slane %v105, 0
    %v108 = vsel %vm76, %v100, 0
    %110 = vmatpush.msra.mxu0 0.0
    %111 = vmatpush.msra.mxu0 0.0
    %112 = vmatpush.msra.mxu0 0.0
    %113 = vmatpush.msra.mxu0 0.0
    %114 = vmatpush.msra.mxu0 0.0
    %115 = vmatpush.msra.mxu0 0.0
    %116 = vmatpush.msra.mxu0 0.0
    %117 = vmatpush.msra.mxu0 0.0
    %118 = vmatpush.msra.mxu0 0.0
    %119 = vmatpush.msra.mxu0 0.0
    %120 = vmatpush.msra.mxu0 0.0
    %121 = vmatpush.msra.mxu0 0.0
    %122 = vmatpush.msra.mxu0 %v104
    %123 = vmatpush.msra.mxu0 %v103
    %124 = vmatpush.msra.mxu0 %v102
    %125 = vmatpush.msra.mxu0 %v101
    %126 = vmatmul.f32.gmra.mxu0 %v108
    %v127 = vpop.f32.mrf.mxu0
    %v128 = vadd.f32 %v106, %v127
    %129 = vdwg.mxu0
    %v130 = vmax.f32 %v128, -20.0
    %v131 = vmin.f32 %v130, 2.0
    %v132 = vmul.f32 %v131, 1.442695
    %v133 = vpow.pop %v132
    %v134 = vld [vmem:[%s1] sm:$0xff]
    %136 = vrot.lane.b32.xlu0 %v134, 4
    %v137 = vpop.permute.xlu0 %136
    %v139 = vmul.f32 %v133, %v137
    %141 = vrot.lane.b32.xlu0 %v139, 124
    %v142 = vpop.permute.xlu0 %141
    %v144 = vadd.f32 %v128, %v142
    %v145 = vmul.f32 %v134, %v134
    %v146 = vmul.f32 %v145, -0.5
    %148 = vrot.lane.b32.xlu0 %v131, 124
    %v149 = vpop.permute.xlu0 %148
    %v151 = vsub.f32 %v146, %v149
    %v152 = vsub.f32 %v151, 0.9189385
    %v153 = vsub.f32 0.6931472, %v144
    %v154 = vmul.f32 %v144, -2.0
    %v155 = vmax.f32 %v154, 0.0
    %v156 = vand.u32 2147483647, %v154
    %v157 = vsub.f32 0.0, %v156
    %v158 = vmul.f32 %v157, 1.442695
    %v159 = vpow.pop %v158
    %v160 = vadd.f32 %v159, 1.0
    %v161 = vlog2.pop %v160
    %v162 = vmul.f32 %v161, 0.6931472
    %v163 = vadd.f32 %v155, %v162
    %v164 = vsub.f32 %v153, %v163
    %v165 = vmul.f32 %v164, 2.0
    %v166 = vsub.f32 %v152, %v165
    %vm167 = vcmask 31744
    %v168 = vsel %vm167, %v166, 0.0
    %169 = vadd.xlane.f32.xlu0 %v168
    %v170 = vpop.xlane.xlu0 %169
    %v171 = vtanh.pop %v144
    %v172 = vmul.f32 %v171, 2.0
    %v173 = vsel %vm167, %v172, %v170
    %vm174 = vcmask 39936
    %175 = vst.msk [vmem:[#allocation5] sm:$0xff] %vm174, %v173
    // Predicated region
    $region30: #{tpu_custom_call.1} parent=1 // pred_check
      _
    $region31: #{tpu_custom_call.1} parent=1 // pred_check_branch
      %177 = sbr.rel (0) target = $region33
    $region32: #{tpu_custom_call.1} parent=1 // pred_region
      %179 = vsyncadd [#allocation4], 0
      %s181 = sshll.u32 [#allocation5], 4
      %s182 = int_to_ptr.vmem [resolvable:$true] %s181
      %s183 = sshll.u32 %s6, 4
      %s184 = int_to_ptr.hbm [resolvable:$true] %s183
      %186 = dma.vmem_to_hbm [thread:$0]  %s182, 128, %s184, [#allocation4]
    $region33: #{tpu_custom_call.1} parent=1 // pred_fallthru
      _
    // Predicated region
    $region34: #{tpu_custom_call.1} parent=1 // pred_check
      _
    $region35: #{tpu_custom_call.1} parent=1 // pred_check_branch
      %188 = sbr.rel (0) target = $region37
    $region36: #{tpu_custom_call.1} parent=1 // pred_region
      %190 = dma.done [#allocation4], 128
    $region37: #{tpu_custom_call.1} parent=1 // pred_fallthru
      _
    %191 = vsyncpa [#allocation3], 1
    %192 = vsyncpa [#allocation4], 1

</llo_original>
